<compile_context>
chip_gen: v5e
topology: v5e:2x2
jax: 0.10.0
libtpu: 0.0.40
codegen_flags: <defaults>
</compile_context>

<pallas_src>
import functools

import jax
import jax.numpy as jnp
from jax.experimental import pallas as pl
from jax.experimental.pallas import tpu as pltpu

EPS = 1e-5


def _round_up(x, m):
    return (x + m - 1) // m * m


# ------------------------------ Pallas kernel --------------------------------

def _make_conv_bn_relu_kernel(block_p, offsets, inv_count, use_cache):
    """Fused conv3x3 (as shifted matmuls) + train-mode BN + ReLU kernel body."""

    def _conv(x_ref, xh_ref, w_ref):
        # Current lane tile + halo (both multiples of 128 lanes -> clean concat).
        xwin = jnp.concatenate([x_ref[...], xh_ref[0]], axis=-1)   # (Cin, BP+HALO)
        # In-register im2col: 9 statically shifted lane views stacked on the K axis.
        xcol = jnp.concatenate(
            [xwin[:, off:off + block_p] for off in offsets], axis=0)  # (9*Cin, BP)
        # One lane-dense matmul per tile: (Cout, 9*Cin) @ (9*Cin, BP).
        return jnp.dot(w_ref[...], xcol, preferred_element_type=jnp.float32)

    def kernel(x_ref, xh_ref, w_ref, g_ref, bt_ref, m_ref, o_ref,
               sum_ref, ssq_ref, sc_ref, sh_ref, cache_ref=None):
        ph = pl.program_id(0)           # 0 = statistics pass, 1 = normalize pass
        t = pl.program_id(1)            # P-tile index
        nt = pl.num_programs(1)

        @pl.when((ph == 0) & (t == 0))
        def _init():
            sum_ref[...] = jnp.zeros_like(sum_ref)
            ssq_ref[...] = jnp.zeros_like(ssq_ref)

        if use_cache:
            @pl.when(ph == 0)
            def _stats():
                y = _conv(x_ref, xh_ref, w_ref)
                cache_ref[t] = y                              # stash for phase 1
                ym = y * m_ref[...]                           # (1, BP) validity mask
                sum_ref[...] += jnp.sum(ym, axis=1, keepdims=True)
                ssq_ref[...] += jnp.sum(ym * y, axis=1, keepdims=True)

            @pl.when(ph == 1)
            def _normalize():
                o_ref[...] = jnp.maximum(
                    cache_ref[t] * sc_ref[...] + sh_ref[...], 0.0)
        else:
            y = _conv(x_ref, xh_ref, w_ref)                   # recompute both phases

            @pl.when(ph == 0)
            def _stats():
                ym = y * m_ref[...]
                sum_ref[...] += jnp.sum(ym, axis=1, keepdims=True)
                ssq_ref[...] += jnp.sum(ym * y, axis=1, keepdims=True)

            @pl.when(ph == 1)
            def _normalize():
                o_ref[...] = jnp.maximum(y * sc_ref[...] + sh_ref[...], 0.0)

        @pl.when((ph == 0) & (t == nt - 1))
        def _finalize():
            mean = sum_ref[...] * inv_count
            var = jnp.maximum(ssq_ref[...] * inv_count - mean * mean, 0.0)
            scale = g_ref[...] * jax.lax.rsqrt(var + EPS)     # fused gamma/rsqrt
            sc_ref[...] = scale
            sh_ref[...] = bt_ref[...] - mean * scale          # fused beta/-mean

    return kernel


# ------------------------------- forward pass --------------------------------

def conv_block_forward(x, params, *, stride=1, padding=1, block_p=512):
    """NCHW forward of conv_block: Conv2d(3x3,stride,padding,bias)+BN(train)+ReLU."""
    assert block_p % 128 == 0
    n, cin, h, w_sp = x.shape
    w = params["w"]                              # (Cout, Cin, 3, 3)
    cout = w.shape[0]
    hp, wp = h + 2 * padding, w_sp + 2 * padding
    ho = (hp - 3) // stride + 1
    wo = (wp - 3) // stride + 1

    cin_p = _round_up(cin, 8)                    # sublane-pad channels
    cout_p = _round_up(cout, 8)
    img = hp * wp
    lq = n * img                                 # flat (n, padded-row, padded-col) axis
    block_p = min(block_p, _round_up(lq, 128))   # don't over-tile tiny problems
    lq_pad = _round_up(lq, block_p)
    n_tiles = lq_pad // block_p
    halo = _round_up(2 * wp + 2, 128)            # max tap shift, whole vregs of lanes
    lx = lq_pad + halo

    # ---- XLA-side layout plumbing (channel-major, flattened, zero-padded) ----
    xp = jnp.pad(x.astype(jnp.float32),
                 ((0, 0), (0, cin_p - cin), (padding, padding), (padding, padding)))
    xf = jnp.transpose(xp, (1, 0, 2, 3)).reshape(cin_p, lq)
    xf = jnp.pad(xf, ((0, 0), (0, lx - lq)))
    # Per-tile halo side-band so no BlockSpec window has to overlap.
    xh = jnp.stack([xf[:, (t + 1) * block_p:(t + 1) * block_p + halo]
                    for t in range(n_tiles)], axis=0)          # (T, Cin, HALO)

    # (Cout, 9*Cin) weight matrix, (ky, kx, ci) contraction order.
    wq = jnp.pad(w.astype(jnp.float32),
                 ((0, cout_p - cout), (0, cin_p - cin), (0, 0), (0, 0)))
    wmat = jnp.transpose(wq, (0, 2, 3, 1)).reshape(cout_p, 9 * cin_p)

    gamma = jnp.pad(params["gamma"].reshape(cout, 1).astype(jnp.float32),
                    ((0, cout_p - cout), (0, 0)), constant_values=1.0)
    beta = jnp.pad(params["beta"].reshape(cout, 1).astype(jnp.float32),
                   ((0, cout_p - cout), (0, 0)))
    # NOTE: params["b"] (conv bias) is intentionally not used here — it is
    # exactly cancelled by the train-mode BatchNorm mean subtraction.

    # Mask of flat positions that are real (strided) conv outputs; everything
    # else (row wrap-around cols, bottom padding rows, tile tail) is junk.
    q = jnp.arange(lq_pad, dtype=jnp.int32)
    row = (q % img) // wp
    col = q % wp
    valid = ((q < lq)
             & (row % stride == 0) & (row < stride * ho)
             & (col % stride == 0) & (col < stride * wo))
    mask = valid.astype(jnp.float32).reshape(1, lq_pad)

    offsets = tuple(ky * wp + kx for ky in range(3) for kx in range(3))
    inv_count = 1.0 / float(n * ho * wo)

    # Cache the phase-0 conv result in VMEM when it comfortably fits, so the
    # normalize pass neither re-streams the activation nor redoes the matmul.
    cache_bytes = n_tiles * cout_p * block_p * 4
    use_cache = cache_bytes <= (6 << 20)

    kernel = _make_conv_bn_relu_kernel(block_p, offsets, inv_count, use_cache)

    if use_cache:
        # Freeze activation / halo / mask streams at the last tile during the
        # normalize phase (no new DMAs — phase 1 reads only the VMEM cache).
        x_map = lambda ph, t: (0, t * (1 - ph) + (n_tiles - 1) * ph)
        xh_map = lambda ph, t: (t * (1 - ph) + (n_tiles - 1) * ph, 0, 0)
    else:
        x_map = lambda ph, t: (0, t)
        xh_map = lambda ph, t: (t, 0, 0)
    m_map = lambda ph, t: (0, t * (1 - ph) + (n_tiles - 1) * ph)  # mask only in phase 0

    scratch_shapes = [
        pltpu.VMEM((cout_p, 1), jnp.float32),   # sum
        pltpu.VMEM((cout_p, 1), jnp.float32),   # sum of squares
        pltpu.VMEM((cout_p, 1), jnp.float32),   # fused BN scale
        pltpu.VMEM((cout_p, 1), jnp.float32),   # fused BN shift
    ]
    if use_cache:
        scratch_shapes.append(pltpu.VMEM((n_tiles, cout_p, block_p), jnp.float32))

    out_flat = pl.pallas_call(
        kernel,
        out_shape=jax.ShapeDtypeStruct((cout_p, lq_pad), jnp.float32),
        grid=(2, n_tiles),
        in_specs=[
            pl.BlockSpec((cin_p, block_p), x_map),                 # activation tile
            pl.BlockSpec((1, cin_p, halo), xh_map),                # halo side-band
            pl.BlockSpec((cout_p, 9 * cin_p), lambda ph, t: (0, 0)),  # weights (resident)
            pl.BlockSpec((cout_p, 1), lambda ph, t: (0, 0)),       # gamma
            pl.BlockSpec((cout_p, 1), lambda ph, t: (0, 0)),       # beta
            pl.BlockSpec((1, block_p), m_map),                     # validity mask
        ],
        # Lane-dense output; resident (no writes) during the stats phase,
        # streamed tile-by-tile during the normalize phase.
        out_specs=pl.BlockSpec((cout_p, block_p), lambda ph, t: (0, t * ph)),
        scratch_shapes=scratch_shapes,
        compiler_params=pltpu.CompilerParams(
            dimension_semantics=("arbitrary", "arbitrary")),
    )(xf, xh, wmat, gamma, beta, mask)

    # Extract the valid strided outputs and return NCHW.
    out = out_flat[:cout, :lq].reshape(cout, n, hp, wp)
    out = out[:, :, 0:stride * ho:stride, 0:stride * wo:stride]
    return jnp.transpose(out, (1, 0, 2, 3))


# ---------------------------- pure-JAX reference ------------------------------

def conv_block_reference(x, params, *, stride=1, padding=1):
    y = jax.lax.conv_general_dilated(
        x, params["w"], window_strides=(stride, stride),
        padding=[(padding, padding), (padding, padding)],
        dimension_numbers=("NCHW", "OIHW", "NCHW"))
    y = y + params["b"].reshape(1, -1, 1, 1)                  # conv bias (kept here)
    mean = jnp.mean(y, axis=(0, 2, 3), keepdims=True)          # BN train-mode stats
    var = jnp.mean(jnp.square(y - mean), axis=(0, 2, 3), keepdims=True)
    yn = (y - mean) * jax.lax.rsqrt(var + EPS)
    yn = params["gamma"].reshape(1, -1, 1, 1) * yn + params["beta"].reshape(1, -1, 1, 1)
    return jnp.maximum(yn, 0.0)


# ----------------------------------- main -------------------------------------

if __name__ == "__main__":
    key = jax.random.PRNGKey(0)
    kx, kw, kb = jax.random.split(key, 3)

    N, Cin, H, W = 2, 4, 16, 16
    Cout = 16
    x = jax.random.normal(kx, (N, Cin, H, W), jnp.float32)
    params = dict(
        w=0.1 * jax.random.normal(kw, (Cout, Cin, 3, 3), jnp.float32),
        b=0.1 * jax.random.normal(kb, (Cout,), jnp.float32),
        gamma=jnp.ones((Cout,), jnp.float32),   # fresh BatchNorm2d
        beta=jnp.zeros((Cout,), jnp.float32),
    )

    for stride in (1, 2):
        fwd = jax.jit(functools.partial(conv_block_forward, stride=stride, padding=1))
        out = fwd(x, params)
        jax.block_until_ready(out)

        ref = conv_block_reference(x, params, stride=stride, padding=1)
        ho = (H + 2 - 3) // stride + 1
        wo = (W + 2 - 3) // stride + 1
        assert out.shape == (N, Cout, ho, wo), out.shape
        assert out.shape == ref.shape
        assert bool(jnp.all(jnp.isfinite(out)))
        assert bool(jnp.all(out >= 0.0))
        err = float(jnp.max(jnp.abs(out - ref)))
        assert err < 5e-2, f"stride={stride} max abs err {err}"

    print("KERNEL_OK")
</pallas_src>

<mosaic_0001>
module attributes {stable_mosaic.version = 11 : i64} {
  func.func @kernel(%arg0: i32, %arg1: i32, %arg2: memref<8x512xf32, #tpu.memory_space<vmem>>, %arg3: memref<1x8x128xf32, #tpu.memory_space<vmem>>, %arg4: memref<16x72xf32, #tpu.memory_space<vmem>>, %arg5: memref<16x1xf32, #tpu.memory_space<vmem>>, %arg6: memref<16x1xf32, #tpu.memory_space<vmem>>, %arg7: memref<1x512xf32, #tpu.memory_space<vmem>>, %arg8: memref<16x512xf32, #tpu.memory_space<vmem>>, %arg9: memref<16x1xf32, #tpu.memory_space<vmem>>, %arg10: memref<16x1xf32, #tpu.memory_space<vmem>>, %arg11: memref<16x1xf32, #tpu.memory_space<vmem>>, %arg12: memref<16x1xf32, #tpu.memory_space<vmem>>, %arg13: memref<2x16x512xf32, #tpu.memory_space<vmem>>) attributes {dimension_semantics = [#tpu.dimension_semantics<arbitrary>, #tpu.dimension_semantics<arbitrary>], iteration_bounds = array<i64: 2, 2>, scalar_prefetch = 0 : i64, scratch_operands = 5 : i64, tpu.core_type = #tpu.core_type<tc>, window_params = [{transform_indices = @transform_0, window_bounds = array<i64: 8, 512>}, {transform_indices = @transform_1, window_bounds = array<i64: 1, 8, 128>}, {pipeline_mode = #tpu.pipeline_mode<synchronous>, transform_indices = @transform_2, window_bounds = array<i64: 16, 72>}, {pipeline_mode = #tpu.pipeline_mode<synchronous>, transform_indices = @transform_3, window_bounds = array<i64: 16, 1>}, {pipeline_mode = #tpu.pipeline_mode<synchronous>, transform_indices = @transform_4, window_bounds = array<i64: 16, 1>}, {transform_indices = @transform_5, window_bounds = array<i64: 1, 512>}, {transform_indices = @transform_6, window_bounds = array<i64: 16, 512>}]} {
    %c0_i32 = arith.constant 0 : i32
    %0 = arith.cmpi eq, %arg0, %c0_i32 : i32
    %c0_i32_0 = arith.constant 0 : i32
    %1 = arith.cmpi eq, %arg1, %c0_i32_0 : i32
    %2 = arith.andi %0, %1 : i1
    %3 = arith.extui %2 : i1 to i32
    %c0_i32_1 = arith.constant 0 : i32
    %4 = arith.cmpi ne, %3, %c0_i32_1 : i32
    scf.if %4 {
      %cst = arith.constant 0.000000e+00 : f32
      %16 = vector.broadcast %cst : f32 to vector<16x1xf32>
      %c0 = arith.constant 0 : index
      %c0_8 = arith.constant 0 : index
      %17 = vector.load %arg9[%c0, %c0_8] : memref<16x1xf32, #tpu.memory_space<vmem>>, vector<16x1xf32>
      tpu.vector_store %arg9[%c0, %c0_8], %16 {strides = array<i32>} : memref<16x1xf32, #tpu.memory_space<vmem>>, vector<16x1xf32>,
      %cst_9 = arith.constant 0.000000e+00 : f32
      %18 = vector.broadcast %cst_9 : f32 to vector<16x1xf32>
      %c0_10 = arith.constant 0 : index
      %c0_11 = arith.constant 0 : index
      %19 = vector.load %arg10[%c0_10, %c0_11] : memref<16x1xf32, #tpu.memory_space<vmem>>, vector<16x1xf32>
      tpu.vector_store %arg10[%c0_10, %c0_11], %18 {strides = array<i32>} : memref<16x1xf32, #tpu.memory_space<vmem>>, vector<16x1xf32>,
    } else {
    }
    %c0_i32_2 = arith.constant 0 : i32
    %5 = arith.cmpi eq, %arg0, %c0_i32_2 : i32
    %6 = arith.extui %5 : i1 to i32
    %c0_i32_3 = arith.constant 0 : i32
    %7 = arith.cmpi ne, %6, %c0_i32_3 : i32
    scf.if %7 {
      %c0 = arith.constant 0 : index
      %c0_8 = arith.constant 0 : index
      %16 = vector.load %arg2[%c0, %c0_8] : memref<8x512xf32, #tpu.memory_space<vmem>>, vector<8x512xf32>
      %c0_9 = arith.constant 0 : index
      %c0_10 = arith.constant 0 : index
      %c0_11 = arith.constant 0 : index
      %17 = vector.load %arg3[%c0_9, %c0_10, %c0_11] : memref<1x8x128xf32, #tpu.memory_space<vmem>>, vector<1x8x128xf32>
      %18 = vector.shape_cast %17 : vector<1x8x128xf32> to vector<8x128xf32>
      %19 = tpu.concatenate %16, %18 in 1 : vector<8x512xf32>, vector<8x128xf32> -> vector<8x640xf32>
      %20 = vector.extract_strided_slice %19 {offsets = [0, 0], sizes = [8, 512], strides = [1, 1]} : vector<8x640xf32> to vector<8x512xf32>
      %21 = vector.extract_strided_slice %19 {offsets = [0, 1], sizes = [8, 512], strides = [1, 1]} : vector<8x640xf32> to vector<8x512xf32>
      %22 = vector.extract_strided_slice %19 {offsets = [0, 2], sizes = [8, 512], strides = [1, 1]} : vector<8x640xf32> to vector<8x512xf32>
      %23 = vector.extract_strided_slice %19 {offsets = [0, 18], sizes = [8, 512], strides = [1, 1]} : vector<8x640xf32> to vector<8x512xf32>
      %24 = vector.extract_strided_slice %19 {offsets = [0, 19], sizes = [8, 512], strides = [1, 1]} : vector<8x640xf32> to vector<8x512xf32>
      %25 = vector.extract_strided_slice %19 {offsets = [0, 20], sizes = [8, 512], strides = [1, 1]} : vector<8x640xf32> to vector<8x512xf32>
      %26 = vector.extract_strided_slice %19 {offsets = [0, 36], sizes = [8, 512], strides = [1, 1]} : vector<8x640xf32> to vector<8x512xf32>
      %27 = vector.extract_strided_slice %19 {offsets = [0, 37], sizes = [8, 512], strides = [1, 1]} : vector<8x640xf32> to vector<8x512xf32>
      %28 = vector.extract_strided_slice %19 {offsets = [0, 38], sizes = [8, 512], strides = [1, 1]} : vector<8x640xf32> to vector<8x512xf32>
      %29 = tpu.concatenate %20, %21, %22, %23, %24, %25, %26, %27, %28 in 0 : vector<8x512xf32>, vector<8x512xf32>, vector<8x512xf32>, vector<8x512xf32>, vector<8x512xf32>, vector<8x512xf32>, vector<8x512xf32>, vector<8x512xf32>, vector<8x512xf32> -> vector<72x512xf32>
      %c0_12 = arith.constant 0 : index
      %c0_13 = arith.constant 0 : index
      %30 = vector.load %arg4[%c0_12, %c0_13] : memref<16x72xf32, #tpu.memory_space<vmem>>, vector<16x72xf32>
      %cst = arith.constant dense<0.000000e+00> : vector<16x512xf32>
      %31 = tpu.matmul %30, %29, %cst {dimension_numbers = #tpu.dot_dimension_numbers<[1], [0], [0], [1], [0, 0, 1, 1], [], []>} : vector<16x72xf32>, vector<72x512xf32>, vector<16x512xf32> -> vector<16x512xf32>
      %32 = arith.index_cast %arg1 : i32 to index
      %c0_14 = arith.constant 0 : index
      %c0_15 = arith.constant 0 : index
      %33 = vector.load %arg13[%32, %c0_14, %c0_15] : memref<2x16x512xf32, #tpu.memory_space<vmem>>, vector<1x16x512xf32>
      %34 = vector.shape_cast %33 : vector<1x16x512xf32> to vector<16x512xf32>
      %35 = vector.shape_cast %31 : vector<16x512xf32> to vector<1x16x512xf32>
      tpu.vector_store %arg13[%32, %c0_14, %c0_15], %35 {strides = array<i32>} : memref<2x16x512xf32, #tpu.memory_space<vmem>>, vector<1x16x512xf32>,
      %c0_16 = arith.constant 0 : index
      %c0_17 = arith.constant 0 : index
      %36 = vector.load %arg7[%c0_16, %c0_17] : memref<1x512xf32, #tpu.memory_space<vmem>>, vector<1x512xf32>
      %37 = vector.broadcast %36 : vector<1x512xf32> to vector<16x512xf32>
      %38 = arith.mulf %31, %37 : vector<16x512xf32>
      %c0_18 = arith.constant 0 : index
      %c0_19 = arith.constant 0 : index
      %39 = vector.load %arg9[%c0_18, %c0_19] : memref<16x1xf32, #tpu.memory_space<vmem>>, vector<16x1xf32>
      %cst_20 = arith.constant dense<0.000000e+00> : vector<16xf32>
      %40 = vector.multi_reduction <add>, %38, %cst_20 [1] : vector<16x512xf32> to vector<16xf32>
      %41 = vector.shape_cast %40 : vector<16xf32> to vector<16x1xf32>
      %42 = arith.addf %39, %41 : vector<16x1xf32>
      %c0_21 = arith.constant 0 : index
      %c0_22 = arith.constant 0 : index
      %43 = vector.load %arg9[%c0_21, %c0_22] : memref<16x1xf32, #tpu.memory_space<vmem>>, vector<16x1xf32>
      tpu.vector_store %arg9[%c0_21, %c0_22], %42 {strides = array<i32>} : memref<16x1xf32, #tpu.memory_space<vmem>>, vector<16x1xf32>,
      %c0_23 = arith.constant 0 : index
      %c0_24 = arith.constant 0 : index
      %44 = vector.load %arg10[%c0_23, %c0_24] : memref<16x1xf32, #tpu.memory_space<vmem>>, vector<16x1xf32>
      %45 = arith.mulf %38, %31 : vector<16x512xf32>
      %cst_25 = arith.constant dense<0.000000e+00> : vector<16xf32>
      %46 = vector.multi_reduction <add>, %45, %cst_25 [1] : vector<16x512xf32> to vector<16xf32>
      %47 = vector.shape_cast %46 : vector<16xf32> to vector<16x1xf32>
      %48 = arith.addf %44, %47 : vector<16x1xf32>
      %c0_26 = arith.constant 0 : index
      %c0_27 = arith.constant 0 : index
      %49 = vector.load %arg10[%c0_26, %c0_27] : memref<16x1xf32, #tpu.memory_space<vmem>>, vector<16x1xf32>
      tpu.vector_store %arg10[%c0_26, %c0_27], %48 {strides = array<i32>} : memref<16x1xf32, #tpu.memory_space<vmem>>, vector<16x1xf32>,
    } else {
    }
    %c1_i32 = arith.constant 1 : i32
    %8 = arith.cmpi eq, %arg0, %c1_i32 : i32
    %9 = arith.extui %8 : i1 to i32
    %c0_i32_4 = arith.constant 0 : i32
    %10 = arith.cmpi ne, %9, %c0_i32_4 : i32
    scf.if %10 {
      %16 = arith.index_cast %arg1 : i32 to index
      %c0 = arith.constant 0 : index
      %c0_8 = arith.constant 0 : index
      %17 = vector.load %arg13[%16, %c0, %c0_8] : memref<2x16x512xf32, #tpu.memory_space<vmem>>, vector<1x16x512xf32>
      %18 = vector.shape_cast %17 : vector<1x16x512xf32> to vector<16x512xf32>
      %c0_9 = arith.constant 0 : index
      %c0_10 = arith.constant 0 : index
      %19 = vector.load %arg11[%c0_9, %c0_10] : memref<16x1xf32, #tpu.memory_space<vmem>>, vector<16x1xf32>
      %20 = vector.broadcast %19 : vector<16x1xf32> to vector<16x512xf32>
      %21 = arith.mulf %18, %20 : vector<16x512xf32>
      %c0_11 = arith.constant 0 : index
      %c0_12 = arith.constant 0 : index
      %22 = vector.load %arg12[%c0_11, %c0_12] : memref<16x1xf32, #tpu.memory_space<vmem>>, vector<16x1xf32>
      %23 = vector.broadcast %22 : vector<16x1xf32> to vector<16x512xf32>
      %24 = arith.addf %21, %23 : vector<16x512xf32>
      %cst = arith.constant 0.000000e+00 : f32
      %25 = vector.broadcast %cst : f32 to vector<16x512xf32>
      %26 = arith.maximumf %24, %25 : vector<16x512xf32>
      %c0_13 = arith.constant 0 : index
      %c0_14 = arith.constant 0 : index
      %27 = vector.load %arg8[%c0_13, %c0_14] : memref<16x512xf32, #tpu.memory_space<vmem>>, vector<16x512xf32>
      tpu.vector_store %arg8[%c0_13, %c0_14], %26 {strides = array<i32>} : memref<16x512xf32, #tpu.memory_space<vmem>>, vector<16x512xf32>,
    } else {
    }
    %c0_i32_5 = arith.constant 0 : i32
    %11 = arith.cmpi eq, %arg0, %c0_i32_5 : i32
    %c1_i32_6 = arith.constant 1 : i32
    %12 = arith.cmpi eq, %arg1, %c1_i32_6 : i32
    %13 = arith.andi %11, %12 : i1
    %14 = arith.extui %13 : i1 to i32
    %c0_i32_7 = arith.constant 0 : i32
    %15 = arith.cmpi ne, %14, %c0_i32_7 : i32
    scf.if %15 {
      %c0 = arith.constant 0 : index
      %c0_8 = arith.constant 0 : index
      %16 = vector.load %arg9[%c0, %c0_8] : memref<16x1xf32, #tpu.memory_space<vmem>>, vector<16x1xf32>
      %cst = arith.constant 0.001953125 : f32
      %17 = vector.broadcast %cst : f32 to vector<16x1xf32>
      %18 = arith.mulf %16, %17 : vector<16x1xf32>
      %c0_9 = arith.constant 0 : index
      %c0_10 = arith.constant 0 : index
      %19 = vector.load %arg10[%c0_9, %c0_10] : memref<16x1xf32, #tpu.memory_space<vmem>>, vector<16x1xf32>
      %cst_11 = arith.constant 0.001953125 : f32
      %20 = vector.broadcast %cst_11 : f32 to vector<16x1xf32>
      %21 = arith.mulf %19, %20 : vector<16x1xf32>
      %22 = arith.mulf %18, %18 : vector<16x1xf32>
      %23 = arith.subf %21, %22 : vector<16x1xf32>
      %cst_12 = arith.constant 0.000000e+00 : f32
      %24 = vector.broadcast %cst_12 : f32 to vector<16x1xf32>
      %25 = arith.maximumf %23, %24 : vector<16x1xf32>
      %c0_13 = arith.constant 0 : index
      %c0_14 = arith.constant 0 : index
      %26 = vector.load %arg5[%c0_13, %c0_14] : memref<16x1xf32, #tpu.memory_space<vmem>>, vector<16x1xf32>
      %cst_15 = arith.constant 9.99999974E-6 : f32
      %27 = vector.broadcast %cst_15 : f32 to vector<16x1xf32>
      %28 = arith.addf %25, %27 : vector<16x1xf32>
      %29 = math.rsqrt %28 : vector<16x1xf32>
      %30 = arith.mulf %26, %29 : vector<16x1xf32>
      %c0_16 = arith.constant 0 : index
      %c0_17 = arith.constant 0 : index
      %31 = vector.load %arg11[%c0_16, %c0_17] : memref<16x1xf32, #tpu.memory_space<vmem>>, vector<16x1xf32>
      tpu.vector_store %arg11[%c0_16, %c0_17], %30 {strides = array<i32>} : memref<16x1xf32, #tpu.memory_space<vmem>>, vector<16x1xf32>,
      %c0_18 = arith.constant 0 : index
      %c0_19 = arith.constant 0 : index
      %32 = vector.load %arg6[%c0_18, %c0_19] : memref<16x1xf32, #tpu.memory_space<vmem>>, vector<16x1xf32>
      %33 = arith.mulf %18, %30 : vector<16x1xf32>
      %34 = arith.subf %32, %33 : vector<16x1xf32>
      %c0_20 = arith.constant 0 : index
      %c0_21 = arith.constant 0 : index
      %35 = vector.load %arg12[%c0_20, %c0_21] : memref<16x1xf32, #tpu.memory_space<vmem>>, vector<16x1xf32>
      tpu.vector_store %arg12[%c0_20, %c0_21], %34 {strides = array<i32>} : memref<16x1xf32, #tpu.memory_space<vmem>>, vector<16x1xf32>,
    } else {
    }
    return
  }
  func.func @transform_0(%arg0: i32, %arg1: i32) -> (i32, i32) {
    %c1_i32 = arith.constant 1 : i32
    %0 = arith.subi %c1_i32, %arg0 : i32
    %1 = arith.muli %arg1, %0 : i32
    %c1_i32_0 = arith.constant 1 : i32
    %2 = arith.muli %c1_i32_0, %arg0 : i32
    %3 = arith.addi %1, %2 : i32
    %c0_i32 = arith.constant 0 : i32
    %c0_i32_1 = arith.constant 0 : i32
    return %c0_i32, %3 : i32, i32
  }
  func.func @transform_1(%arg0: i32, %arg1: i32) -> (i32, i32, i32) {
    %c1_i32 = arith.constant 1 : i32
    %0 = arith.subi %c1_i32, %arg0 : i32
    %1 = arith.muli %arg1, %0 : i32
    %c1_i32_0 = arith.constant 1 : i32
    %2 = arith.muli %c1_i32_0, %arg0 : i32
    %3 = arith.addi %1, %2 : i32
    %c0_i32 = arith.constant 0 : i32
    %c0_i32_1 = arith.constant 0 : i32
    %c0_i32_2 = arith.constant 0 : i32
    return %3, %c0_i32, %c0_i32_1 : i32, i32, i32
  }
  func.func @transform_2(%arg0: i32, %arg1: i32) -> (i32, i32) {
    %c0_i32 = arith.constant 0 : i32
    %c0_i32_0 = arith.constant 0 : i32
    %c0_i32_1 = arith.constant 0 : i32
    return %c0_i32, %c0_i32_0 : i32, i32
  }
  func.func @transform_3(%arg0: i32, %arg1: i32) -> (i32, i32) {
    %c0_i32 = arith.constant 0 : i32
    %c0_i32_0 = arith.constant 0 : i32
    %c0_i32_1 = arith.constant 0 : i32
    return %c0_i32, %c0_i32_0 : i32, i32
  }
  func.func @transform_4(%arg0: i32, %arg1: i32) -> (i32, i32) {
    %c0_i32 = arith.constant 0 : i32
    %c0_i32_0 = arith.constant 0 : i32
    %c0_i32_1 = arith.constant 0 : i32
    return %c0_i32, %c0_i32_0 : i32, i32
  }
  func.func @transform_5(%arg0: i32, %arg1: i32) -> (i32, i32) {
    %c1_i32 = arith.constant 1 : i32
    %0 = arith.subi %c1_i32, %arg0 : i32
    %1 = arith.muli %arg1, %0 : i32
    %c1_i32_0 = arith.constant 1 : i32
    %2 = arith.muli %c1_i32_0, %arg0 : i32
    %3 = arith.addi %1, %2 : i32
    %c0_i32 = arith.constant 0 : i32
    %c0_i32_1 = arith.constant 0 : i32
    return %c0_i32, %3 : i32, i32
  }
  func.func @transform_6(%arg0: i32, %arg1: i32) -> (i32, i32) {
    %0 = arith.muli %arg1, %arg0 : i32
    %c0_i32 = arith.constant 0 : i32
    %c0_i32_0 = arith.constant 0 : i32
    return %c0_i32, %0 : i32, i32
  }
}

</mosaic_0001>

<llo_original>
// kernel: conv_block_forward.1
$region0: #{conv_block_forward.1}
  #allocation0 [shape = 'u32[]', space=smem, size = 0x4, offset = 0x4, fixed_abs, tag = 'smem constant byte address 0x4 - core index']
  #allocation1 [shape = 'u32[72,128]{1,0:T(1,128)}', space=vmem, size = 0x9000, scoped, tag = 'internal scratch']
  #allocation2 [shape = 'f32[16,1]{1,0:T(8,128)}', space=vmem, size = 0x2000, scoped, tag = 'scratch operand']
  #allocation3 [shape = 'f32[16,1]{1,0:T(8,128)}', space=vmem, size = 0x2000, scoped, tag = 'scratch operand']
  #allocation4 [shape = 'f32[16,1]{1,0:T(8,128)}', space=vmem, size = 0x2000, scoped, tag = 'scratch operand']
  #allocation5 [shape = 'f32[16,1]{1,0:T(8,128)}', space=vmem, size = 0x2000, scoped, tag = 'scratch operand']
  #allocation6 [shape = 'f32[2,16,512]{2,1,0:T(8,128)}', space=vmem, size = 0x10000, scoped, tag = 'scratch operand']
  %s0 = inlined_call_operand.vmem [shape: f32[8,1152], index: 0, kind: input, shape index: {}]
  %s1 = inlined_call_operand.vmem [shape: f32[2,8,128], index: 1, kind: input, shape index: {}]
  %s2 = inlined_call_operand.vmem [shape: f32[16,72], index: 2, kind: input, shape index: {}]
  %s3 = inlined_call_operand.vmem [shape: f32[16,1], index: 3, kind: input, shape index: {}]
  %s4 = inlined_call_operand.vmem [shape: f32[16,1], index: 4, kind: input, shape index: {}]
  %s5 = inlined_call_operand.vmem [shape: f32[1,1024], index: 5, kind: input, shape index: {}]
  %s6 = inlined_call_operand.vmem [shape: f32[16,1024], index: 6, kind: output, shape index: {}]
  %s7 = sld [smem:[#allocation0]]
  $region92: #{conv_block_forward.1} parent=0
    _
  %s9 = ssub.s32 1, %s7
  %s10 = scalar_select 0, %s9, %s7
  $region1: #{conv_block_forward.1} parent=0
    #allocation7 [shape = 'u8[65536]{0}', space=vmem, size = 0x10000, scoped, tag = 'output window, operand 0']
    loop: start=0, step=1, limit=6
    $region2: #{conv_block_forward.1} parent=1 // loop_pre_header
      _
    $region3: #{conv_block_forward.1} parent=1 // loop_header
      %s12 = sphi 0, %s16
      %p13 = scmp.ge.s32.totalorder %s12, 6
      %s19 = sphi 0, %s31
      %s20 = sphi 0, %s27
      %s21 = sphi 0, %s19
      %s22 = sphi 0, %s20
      %s23 = sphi 0, %s21
      %s24 = sphi 0, %s22
      %s40 = sphi 0, %s42
      %s43 = sphi 0, %s40
      %s44 = sphi 0, %s43
      %s60 = sphi 0, %s44
      %s72 = sphi 0, %s74
      %s75 = sphi 0, %s72
      %s76 = sphi 0, %s75
      %s92 = sphi 0, %s76
      %s96 = sphi 0, %s96
      %s98 = sphi 0, %s96
      %s99 = sphi 0, %s98
      %s113 = sphi 0, %s99
      %s117 = sphi 0, %s117
      %s119 = sphi 0, %s117
      %s120 = sphi 0, %s119
      %s134 = sphi 0, %s120
      %s138 = sphi 0, %s138
      %s140 = sphi 0, %s138
      %s141 = sphi 0, %s140
      %s155 = sphi 0, %s141
      %s167 = sphi 0, %s169
      %s170 = sphi 0, %s167
      %s171 = sphi 0, %s170
      %s187 = sphi 0, %s171
      %s195 = sphi 0, %s197
      %s198 = sphi 0, %s195
      %s199 = sphi 0, %s198
      %s215 = sphi 0, %s199
    $region4: #{conv_block_forward.1} parent=1 // loop_header_branch
      %15 = sbr.rel (%p13) target = $region8
    $region5: #{conv_block_forward.1} parent=1 // loop_body
      %s17 = ssub.s32 %s12, 1
      %s18 = ssub.s32 %s12, 2
      %s25 = sadd.s32 1, %s20
      %p26 = scmp.ge.s32.totalorder %s25, 2
      %s27 = scalar_select %p26, 0, %s25
      %s28 = sadd.s32 1, %s19
      %s29 = scalar_select %p26, %s28, %s19
      %p30 = scmp.ge.s32.totalorder %s29, 2
      %s31 = scalar_select %p30, 0, %s29
      %s32 = ssub.s32 1, %s19
      %s33 = smul.u32 %s20, %s32
      %s34 = sadd.s32 %s33, %s19
      %s35 = ssub.s32 1, %s31
      %s36 = smul.u32 %s27, %s35
      %s37 = sadd.s32 %s36, %s31
      %s38 = ssub.s32 %s34, %s37
      %p39 = scmp.eq.s32.totalorder %s38, 0
      %s41 = sadd.s32 %s40, 1
      %s42 = scalar_select %p39, %s40, %s41
      %p45 = pneg %p39
      %p46 = scmp.eq.s32.totalorder %s12, 3
      %p47 = por %p45, %p46
      %p48 = scmp.ne.s32.totalorder %s40, %s43
      %p49 = scmp.eq.s32.totalorder %s12, 0
      %p50 = por %p48, %p49
      %p51 = scmp.ne.s32.totalorder %s40, %s43
      %p52 = scmp.eq.s32.totalorder %s17, 3
      %p53 = por %p51, %p52
      %p54 = scmp.ne.s32.totalorder %s43, %s44
      %p55 = scmp.eq.s32.totalorder %s17, 0
      %p56 = por %p54, %p55
      %p57 = scmp.ne.s32.totalorder %s43, %s44
      %p58 = scmp.eq.s32.totalorder %s18, 3
      %p59 = por %p57, %p58
      %p61 = scmp.ne.s32.totalorder %s44, %s60
      %p62 = scmp.eq.s32.totalorder %s18, 0
      %p63 = por %p61, %p62
      %s64 = ssub.s32 1, %s19
      %s65 = smul.u32 %s20, %s64
      %s66 = sadd.s32 %s65, %s19
      %s67 = ssub.s32 1, %s31
      %s68 = smul.u32 %s27, %s67
      %s69 = sadd.s32 %s68, %s31
      %s70 = ssub.s32 %s66, %s69
      %p71 = scmp.eq.s32.totalorder %s70, 0
      %s73 = sadd.s32 %s72, 1
      %s74 = scalar_select %p71, %s72, %s73
      %p77 = pneg %p71
      %p78 = scmp.eq.s32.totalorder %s12, 3
      %p79 = por %p77, %p78
      %p80 = scmp.ne.s32.totalorder %s72, %s75
      %p81 = scmp.eq.s32.totalorder %s12, 0
      %p82 = por %p80, %p81
      %p83 = scmp.ne.s32.totalorder %s72, %s75
      %p84 = scmp.eq.s32.totalorder %s17, 3
      %p85 = por %p83, %p84
      %p86 = scmp.ne.s32.totalorder %s75, %s76
      %p87 = scmp.eq.s32.totalorder %s17, 0
      %p88 = por %p86, %p87
      %p89 = scmp.ne.s32.totalorder %s75, %s76
      %p90 = scmp.eq.s32.totalorder %s18, 3
      %p91 = por %p89, %p90
      %p93 = scmp.ne.s32.totalorder %s76, %s92
      %p94 = scmp.eq.s32.totalorder %s18, 0
      %p95 = por %p93, %p94
      %s97 = sadd.s32 %s96, 1
      %p100 = scmp.eq.s32.totalorder %s12, 3
      %p101 = scmp.ne.s32.totalorder %s96, %s98
      %p102 = scmp.eq.s32.totalorder %s12, 0
      %p103 = por %p101, %p102
      %p104 = scmp.ne.s32.totalorder %s96, %s98
      %p105 = scmp.eq.s32.totalorder %s17, 3
      %p106 = por %p104, %p105
      %p107 = scmp.ne.s32.totalorder %s98, %s99
      %p108 = scmp.eq.s32.totalorder %s17, 0
      %p109 = por %p107, %p108
      %p110 = scmp.ne.s32.totalorder %s98, %s99
      %p111 = scmp.eq.s32.totalorder %s18, 3
      %p112 = por %p110, %p111
      %p114 = scmp.ne.s32.totalorder %s99, %s113
      %p115 = scmp.eq.s32.totalorder %s18, 0
      %p116 = por %p114, %p115
      %s118 = sadd.s32 %s117, 1
      %p121 = scmp.eq.s32.totalorder %s12, 3
      %p122 = scmp.ne.s32.totalorder %s117, %s119
      %p123 = scmp.eq.s32.totalorder %s12, 0
      %p124 = por %p122, %p123
      %p125 = scmp.ne.s32.totalorder %s117, %s119
      %p126 = scmp.eq.s32.totalorder %s17, 3
      %p127 = por %p125, %p126
      %p128 = scmp.ne.s32.totalorder %s119, %s120
      %p129 = scmp.eq.s32.totalorder %s17, 0
      %p130 = por %p128, %p129
      %p131 = scmp.ne.s32.totalorder %s119, %s120
      %p132 = scmp.eq.s32.totalorder %s18, 3
      %p133 = por %p131, %p132
      %p135 = scmp.ne.s32.totalorder %s120, %s134
      %p136 = scmp.eq.s32.totalorder %s18, 0
      %p137 = por %p135, %p136
      %s139 = sadd.s32 %s138, 1
      %p142 = scmp.eq.s32.totalorder %s12, 3
      %p143 = scmp.ne.s32.totalorder %s138, %s140
      %p144 = scmp.eq.s32.totalorder %s12, 0
      %p145 = por %p143, %p144
      %p146 = scmp.ne.s32.totalorder %s138, %s140
      %p147 = scmp.eq.s32.totalorder %s17, 3
      %p148 = por %p146, %p147
      %p149 = scmp.ne.s32.totalorder %s140, %s141
      %p150 = scmp.eq.s32.totalorder %s17, 0
      %p151 = por %p149, %p150
      %p152 = scmp.ne.s32.totalorder %s140, %s141
      %p153 = scmp.eq.s32.totalorder %s18, 3
      %p154 = por %p152, %p153
      %p156 = scmp.ne.s32.totalorder %s141, %s155
      %p157 = scmp.eq.s32.totalorder %s18, 0
      %p158 = por %p156, %p157
      %s159 = ssub.s32 1, %s19
      %s160 = smul.u32 %s20, %s159
      %s161 = sadd.s32 %s160, %s19
      %s162 = ssub.s32 1, %s31
      %s163 = smul.u32 %s27, %s162
      %s164 = sadd.s32 %s163, %s31
      %s165 = ssub.s32 %s161, %s164
      %p166 = scmp.eq.s32.totalorder %s165, 0
      %s168 = sadd.s32 %s167, 1
      %s169 = scalar_select %p166, %s167, %s168
      %p172 = pneg %p166
      %p173 = scmp.eq.s32.totalorder %s12, 3
      %p174 = por %p172, %p173
      %p175 = scmp.ne.s32.totalorder %s167, %s170
      %p176 = scmp.eq.s32.totalorder %s12, 0
      %p177 = por %p175, %p176
      %p178 = scmp.ne.s32.totalorder %s167, %s170
      %p179 = scmp.eq.s32.totalorder %s17, 3
      %p180 = por %p178, %p179
      %p181 = scmp.ne.s32.totalorder %s170, %s171
      %p182 = scmp.eq.s32.totalorder %s17, 0
      %p183 = por %p181, %p182
      %p184 = scmp.ne.s32.totalorder %s170, %s171
      %p185 = scmp.eq.s32.totalorder %s18, 3
      %p186 = por %p184, %p185
      %p188 = scmp.ne.s32.totalorder %s171, %s187
      %p189 = scmp.eq.s32.totalorder %s18, 0
      %p190 = por %p188, %p189
      %s191 = smul.u32 %s20, %s19
      %s192 = smul.u32 %s27, %s31
      %s193 = ssub.s32 %s191, %s192
      %p194 = scmp.eq.s32.totalorder %s193, 0
      %s196 = sadd.s32 %s195, 1
      %s197 = scalar_select %p194, %s195, %s196
      %p200 = pneg %p194
      %p201 = scmp.eq.s32.totalorder %s12, 3
      %p202 = por %p200, %p201
      %p203 = scmp.ne.s32.totalorder %s195, %s198
      %p204 = scmp.eq.s32.totalorder %s12, 0
      %p205 = por %p203, %p204
      %p206 = scmp.ne.s32.totalorder %s195, %s198
      %p207 = scmp.eq.s32.totalorder %s17, 3
      %p208 = por %p206, %p207
      %p209 = scmp.ne.s32.totalorder %s198, %s199
      %p210 = scmp.eq.s32.totalorder %s17, 0
      %p211 = por %p209, %p210
      %p212 = scmp.ne.s32.totalorder %s198, %s199
      %p213 = scmp.eq.s32.totalorder %s18, 3
      %p214 = por %p212, %p213
      %p216 = scmp.ne.s32.totalorder %s199, %s215
      %p217 = scmp.eq.s32.totalorder %s18, 0
      %p218 = por %p216, %p217
      %p219 = scmp.le.s32.totalorder 1, %s12
      %p220 = scmp.lt.s32.totalorder %s12, 5
      %p221 = pnand %p219, %p220
      %p222 = pneg %p221
      // Predicated region
      $region9: #{conv_block_forward.1} parent=5 // pred_check
        _
      $region10: #{conv_block_forward.1} parent=5 // pred_check_branch
        %224 = sbr.rel (%p221) target = $region12
      $region11: #{conv_block_forward.1} parent=5 // pred_region
        %s225 = ssub.s32 %s12, 1
        // Predicated region
        $region13: #{conv_block_forward.1} parent=11 // pred_check
          %p226 = pneg %p109
        $region14: #{conv_block_forward.1} parent=11 // pred_check_branch
          %228 = sbr.rel (%p226) target = $region16
        $region15: #{conv_block_forward.1} parent=11 // pred_region
          _
        $region16: #{conv_block_forward.1} parent=11 // pred_fallthru
          _
        // Predicated region
        $region17: #{conv_block_forward.1} parent=11 // pred_check
          %p229 = pneg %p130
        $region18: #{conv_block_forward.1} parent=11 // pred_check_branch
          %231 = sbr.rel (%p229) target = $region20
        $region19: #{conv_block_forward.1} parent=11 // pred_region
          _
        $region20: #{conv_block_forward.1} parent=11 // pred_fallthru
          _
        // Predicated region
        $region21: #{conv_block_forward.1} parent=11 // pred_check
          %p232 = pneg %p151
        $region22: #{conv_block_forward.1} parent=11 // pred_check_branch
          %234 = sbr.rel (%p232) target = $region24
        $region23: #{conv_block_forward.1} parent=11 // pred_region
          _
        $region24: #{conv_block_forward.1} parent=11 // pred_fallthru
          _
      $region12: #{conv_block_forward.1} parent=5 // pred_fallthru
        _
      %p235 = scmp.lt.s32.totalorder %s12, 4
      // Predicated region
      $region25: #{conv_block_forward.1} parent=5 // pred_check
        %p236 = pneg %p235
      $region26: #{conv_block_forward.1} parent=5 // pred_check_branch
        %238 = sbr.rel (%p236) target = $region28
      $region27: #{conv_block_forward.1} parent=5 // pred_region
        // Predicated region
        $region29: #{conv_block_forward.1} parent=27 // pred_check
          %p239 = pneg %p50
        $region30: #{conv_block_forward.1} parent=27 // pred_check_branch
          %241 = sbr.rel (%p239) target = $region32
        $region31: #{conv_block_forward.1} parent=27 // pred_region
          %s242 = ssub.s32 1, %s19
          %s243 = smul.u32 %s20, %s242
          %s244 = sadd.s32 %s243, %s19
          %s245 = smul.u32 4, %s244
          %s246 = ssub.s32 9, %s245
          %p247 = scmp.lt.s32.totalorder %s246, 4
          %s248 = scalar_select %p247, %s246, 4
          %s249 = smul.u32 8, %s248
          %p250 = scmp.lt.s32.totalorder %s245, 8
          %s251 = scalar_select %p250, %s245, 8
          %s252 = smul.addr %s251, 8
          %s253 = scalar_lea.vmem %s0, %s252
          %s254 = ssub.s32 1, %s19
          %s255 = smul.u32 %s20, %s254
          %s256 = sadd.s32 %s255, %s19
          %s257 = smul.u32 4, %s256
          %s258 = ssub.s32 9, %s257
          %p259 = scmp.lt.s32.totalorder %s258, 4
          %s260 = scalar_select %p259, %s258, 4
          %s261 = smul.u32 8, %s260
        $region32: #{conv_block_forward.1} parent=27 // pred_fallthru
          _
        // Predicated region
        $region33: #{conv_block_forward.1} parent=27 // pred_check
          %p262 = pneg %p82
        $region34: #{conv_block_forward.1} parent=27 // pred_check_branch
          %264 = sbr.rel (%p262) target = $region36
        $region35: #{conv_block_forward.1} parent=27 // pred_region
          %s265 = ssub.s32 1, %s19
          %s266 = smul.u32 %s20, %s265
          %s267 = sadd.s32 %s266, %s19
          %p268 = scmp.lt.s32.totalorder %s267, 1
          %s269 = scalar_select %p268, %s267, 1
          %s270 = smul.addr %s269, 8
          %s271 = scalar_lea.vmem %s1, %s270
          %s272 = ssub.s32 1, %s19
          %s273 = smul.u32 %s20, %s272
          %s274 = sadd.s32 %s273, %s19
        $region36: #{conv_block_forward.1} parent=27 // pred_fallthru
          _
        // Predicated region
        $region37: #{conv_block_forward.1} parent=27 // pred_check
          %p275 = pneg %p177
        $region38: #{conv_block_forward.1} parent=27 // pred_check_branch
          %277 = sbr.rel (%p275) target = $region40
        $region39: #{conv_block_forward.1} parent=27 // pred_region
          %s278 = ssub.s32 1, %s19
          %s279 = smul.u32 %s20, %s278
          %s280 = sadd.s32 %s279, %s19
          %s281 = smul.u32 4, %s280
          %p282 = scmp.lt.s32.totalorder %s281, 7
          %s283 = scalar_select %p282, %s281, 7
          %s284 = scalar_lea.vmem %s5, %s283
          %s285 = ssub.s32 1, %s19
          %s286 = smul.u32 %s20, %s285
          %s287 = sadd.s32 %s286, %s19
          %s288 = smul.u32 4, %s287
        $region40: #{conv_block_forward.1} parent=27 // pred_fallthru
          _
      $region28: #{conv_block_forward.1} parent=5 // pred_fallthru
        _
      %p289 = scmp.le.s32.totalorder 1, %s12
      %p290 = scmp.lt.s32.totalorder %s12, 5
      %p291 = pnand %p289, %p290
      %p292 = pneg %p291
      // Predicated region
      $region41: #{conv_block_forward.1} parent=5 // pred_check
        _
      $region42: #{conv_block_forward.1} parent=5 // pred_check_branch
        %294 = sbr.rel (%p291) target = $region44
      $region43: #{conv_block_forward.1} parent=5 // pred_region
        %s295 = ssub.s32 %s12, 1
        %s296 = ssub.s32 1, %s21
        %s297 = smul.u32 %s22, %s296
        %s298 = sadd.s32 %s297, %s21
        %s299 = smul.u32 4, %s298
        %s300 = ssub.s32 9, %s299
        %p301 = scmp.lt.s32.totalorder %s300, 4
        %s302 = scalar_select %p301, %s300, 4
        %s303 = smul.u32 8, %s302
        %p304 = scmp.lt.s32.totalorder %s299, 8
        %s305 = scalar_select %p304, %s299, 8
        %s306 = smul.addr %s305, 8
        %s307 = scalar_lea.vmem %s0, %s306
        %p308 = pneg %p56
        %p309 = pneg %p53
        %s310 = ssub.s32 1, %s21
        %s311 = smul.u32 %s22, %s310
        %s312 = sadd.s32 %s311, %s21
        %p313 = scmp.lt.s32.totalorder %s312, 1
        %s314 = scalar_select %p313, %s312, 1
        %s315 = smul.addr %s314, 8
        %s316 = scalar_lea.vmem %s1, %s315
        %p317 = pneg %p88
        %p318 = pneg %p85
        %p319 = pneg %p109
        %p320 = pneg %p106
        %p321 = pneg %p130
        %p322 = pneg %p127
        %p323 = pneg %p151
        %p324 = pneg %p148
        %s325 = ssub.s32 1, %s21
        %s326 = smul.u32 %s22, %s325
        %s327 = sadd.s32 %s326, %s21
        %s328 = smul.u32 4, %s327
        %p329 = scmp.lt.s32.totalorder %s328, 7
        %s330 = scalar_select %p329, %s328, 7
        %s331 = scalar_lea.vmem %s5, %s330
        %p332 = pneg %p183
        %p333 = pneg %p180
        %p334 = pneg %p211
        %p335 = pneg %p208
        %s336 = sand.u32 %s198, 1
        %s337 = sand.u32 %s198, 1
        %s338 = smul.addr %s337, 64
        %s339 = scalar_lea.vmem [#allocation7], %s338
        %s340 = ssub.s32 1, %s21
        %s341 = smul.u32 %s22, %s340
        %s342 = sadd.s32 %s341, %s21
        %s343 = smul.u32 4, %s342
        %s344 = ssub.s32 9, %s343
        %p345 = scmp.lt.s32.totalorder %s344, 4
        %s346 = scalar_select %p345, %s344, 4
        %s347 = smul.u32 8, %s346
        %p348 = scmp.lt.s32.totalorder %s343, 8
        %s349 = scalar_select %p348, %s343, 8
        %s350 = smul.addr %s349, 8
        %s351 = scalar_lea.vmem %s0, %s350
        %s352 = ssub.s32 1, %s21
        %s353 = smul.u32 %s22, %s352
        %s354 = sadd.s32 %s353, %s21
        %s355 = smul.u32 4, %s354
        %s356 = ssub.s32 9, %s355
        %p357 = scmp.lt.s32.totalorder %s356, 4
        %s358 = scalar_select %p357, %s356, 4
        %s359 = smul.u32 8, %s358
        %s360 = ssub.s32 1, %s21
        %s361 = smul.u32 %s22, %s360
        %s362 = sadd.s32 %s361, %s21
        %p363 = scmp.lt.s32.totalorder %s362, 1
        %s364 = scalar_select %p363, %s362, 1
        %s365 = smul.addr %s364, 8
        %s366 = scalar_lea.vmem %s1, %s365
        %s367 = ssub.s32 1, %s21
        %s368 = smul.u32 %s22, %s367
        %s369 = sadd.s32 %s368, %s21
        %s370 = ssub.s32 1, %s21
        %s371 = smul.u32 %s22, %s370
        %s372 = sadd.s32 %s371, %s21
        %s373 = smul.u32 4, %s372
        %p374 = scmp.lt.s32.totalorder %s373, 7
        %s375 = scalar_select %p374, %s373, 7
        %s376 = scalar_lea.vmem %s5, %s375
        %s377 = ssub.s32 1, %s21
        %s378 = smul.u32 %s22, %s377
        %s379 = sadd.s32 %s378, %s21
        %s380 = smul.u32 4, %s379
        %s381 = smul.u32 %s22, %s21
        %s382 = smul.u32 4, %s381
        %p383 = scmp.eq.s32.totalorder %s21, 0
        %p384 = scmp.eq.s32.totalorder %s22, 0
        %p385 = pnand %p383, %p384
        %p386 = pneg %p385
        // Predicated region
        $region45: #{conv_block_forward.1} parent=43 // pred_check
          _
        $region46: #{conv_block_forward.1} parent=43 // pred_check_branch
          %388 = sbr.rel (%p385) target = $region48
        $region47: #{conv_block_forward.1} parent=43 // pred_region
          %vm389 = vcmask 7168
          %390 = vst.msk [vmem:[#allocation2] sm:$0xff] %vm389, 0.0
          %391 = vst.msk [vmem:[#allocation2 + $0x8] sm:$0xff] %vm389, 0.0
          %392 = vst.msk [vmem:[#allocation3] sm:$0xff] %vm389, 0.0
          %393 = vst.msk [vmem:[#allocation3 + $0x8] sm:$0xff] %vm389, 0.0
        $region48: #{conv_block_forward.1} parent=43 // pred_fallthru
          _
        // Predicated region
        $region49: #{conv_block_forward.1} parent=43 // pred_check
          %p394 = pneg %p383
        $region50: #{conv_block_forward.1} parent=43 // pred_check_branch
          %396 = sbr.rel (%p394) target = $region52
        $region51: #{conv_block_forward.1} parent=43 // pred_region
          %v397 = vld [vmem:[%s351] sm:$0xff]
          %v398 = vld [vmem:[%s351 + $0x8] sm:$0xff]
          %v399 = vld [vmem:[%s351 + $0x10] sm:$0xff]
          %v400 = vld [vmem:[%s351 + $0x18] sm:$0xff]
          %v401 = vld [vmem:[%s366] sm:$0xff]
          %407 = vrot.lane.b32.xlu0 %v397, 127
          %v408 = vpop.permute.xlu0 %407
          %409 = vrot.lane.b32.xlu0 %v398, 127
          %v410 = vpop.permute.xlu0 %409
          %411 = vrot.lane.b32.xlu0 %v399, 127
          %v412 = vpop.permute.xlu0 %411
          %413 = vrot.lane.b32.xlu0 %v400, 127
          %v414 = vpop.permute.xlu0 %413
          %415 = vrot.lane.b32.xlu0 %v401, 127
          %v416 = vpop.permute.xlu0 %415
          %vm417 = vcmask 1039360
          %v418 = vsel %vm417, %v408, %v410
          %v419 = vsel %vm417, %v410, %v412
          %v420 = vsel %vm417, %v412, %v414
          %v421 = vsel %vm417, %v414, %v416
          %426 = vrot.lane.b32.xlu0 %v397, 126
          %v427 = vpop.permute.xlu0 %426
          %428 = vrot.lane.b32.xlu0 %v398, 126
          %v429 = vpop.permute.xlu0 %428
          %430 = vrot.lane.b32.xlu0 %v399, 126
          %v431 = vpop.permute.xlu0 %430
          %432 = vrot.lane.b32.xlu0 %v400, 126
          %v433 = vpop.permute.xlu0 %432
          %434 = vrot.lane.b32.xlu0 %v401, 126
          %v435 = vpop.permute.xlu0 %434
          %vm436 = vcmask 1031168
          %v437 = vsel %vm436, %v427, %v429
          %v438 = vsel %vm436, %v429, %v431
          %v439 = vsel %vm436, %v431, %v433
          %v440 = vsel %vm436, %v433, %v435
          %445 = vrot.lane.b32.xlu0 %v397, 110
          %v446 = vpop.permute.xlu0 %445
          %447 = vrot.lane.b32.xlu0 %v398, 110
          %v448 = vpop.permute.xlu0 %447
          %449 = vrot.lane.b32.xlu0 %v399, 110
          %v450 = vpop.permute.xlu0 %449
          %451 = vrot.lane.b32.xlu0 %v400, 110
          %v452 = vpop.permute.xlu0 %451
          %453 = vrot.lane.b32.xlu0 %v401, 110
          %v454 = vpop.permute.xlu0 %453
          %vm455 = vcmask 900096
          %v456 = vsel %vm455, %v446, %v448
          %v457 = vsel %vm455, %v448, %v450
          %v458 = vsel %vm455, %v450, %v452
          %v459 = vsel %vm455, %v452, %v454
          %464 = vrot.lane.b32.xlu0 %v397, 109
          %v465 = vpop.permute.xlu0 %464
          %466 = vrot.lane.b32.xlu0 %v398, 109
          %v467 = vpop.permute.xlu0 %466
          %468 = vrot.lane.b32.xlu0 %v399, 109
          %v469 = vpop.permute.xlu0 %468
          %470 = vrot.lane.b32.xlu0 %v400, 109
          %v471 = vpop.permute.xlu0 %470
          %472 = vrot.lane.b32.xlu0 %v401, 109
          %v473 = vpop.permute.xlu0 %472
          %vm474 = vcmask 891904
          %v475 = vsel %vm474, %v465, %v467
          %v476 = vsel %vm474, %v467, %v469
          %v477 = vsel %vm474, %v469, %v471
          %v478 = vsel %vm474, %v471, %v473
          %483 = vrot.lane.b32.xlu0 %v397, 108
          %v484 = vpop.permute.xlu0 %483
          %485 = vrot.lane.b32.xlu0 %v398, 108
          %v486 = vpop.permute.xlu0 %485
          %487 = vrot.lane.b32.xlu0 %v399, 108
          %v488 = vpop.permute.xlu0 %487
          %489 = vrot.lane.b32.xlu0 %v400, 108
          %v490 = vpop.permute.xlu0 %489
          %491 = vrot.lane.b32.xlu0 %v401, 108
          %v492 = vpop.permute.xlu0 %491
          %vm493 = vcmask 883712
          %v494 = vsel %vm493, %v484, %v486
          %v495 = vsel %vm493, %v486, %v488
          %v496 = vsel %vm493, %v488, %v490
          %v497 = vsel %vm493, %v490, %v492
          %502 = vrot.lane.b32.xlu0 %v397, 92
          %v503 = vpop.permute.xlu0 %502
          %504 = vrot.lane.b32.xlu0 %v398, 92
          %v505 = vpop.permute.xlu0 %504
          %506 = vrot.lane.b32.xlu0 %v399, 92
          %v507 = vpop.permute.xlu0 %506
          %508 = vrot.lane.b32.xlu0 %v400, 92
          %v509 = vpop.permute.xlu0 %508
          %510 = vrot.lane.b32.xlu0 %v401, 92
          %v511 = vpop.permute.xlu0 %510
          %vm512 = vcmask 752640
          %v513 = vsel %vm512, %v503, %v505
          %v514 = vsel %vm512, %v505, %v507
          %v515 = vsel %vm512, %v507, %v509
          %v516 = vsel %vm512, %v509, %v511
          %521 = vrot.lane.b32.xlu0 %v397, 91
          %v522 = vpop.permute.xlu0 %521
          %523 = vrot.lane.b32.xlu0 %v398, 91
          %v524 = vpop.permute.xlu0 %523
          %525 = vrot.lane.b32.xlu0 %v399, 91
          %v526 = vpop.permute.xlu0 %525
          %527 = vrot.lane.b32.xlu0 %v400, 91
          %v528 = vpop.permute.xlu0 %527
          %529 = vrot.lane.b32.xlu0 %v401, 91
          %v530 = vpop.permute.xlu0 %529
          %vm531 = vcmask 744448
          %v532 = vsel %vm531, %v522, %v524
          %v533 = vsel %vm531, %v524, %v526
          %v534 = vsel %vm531, %v526, %v528
          %v535 = vsel %vm531, %v528, %v530
          %540 = vrot.lane.b32.xlu0 %v397, 90
          %v541 = vpop.permute.xlu0 %540
          %542 = vrot.lane.b32.xlu0 %v398, 90
          %v543 = vpop.permute.xlu0 %542
          %544 = vrot.lane.b32.xlu0 %v399, 90
          %v545 = vpop.permute.xlu0 %544
          %546 = vrot.lane.b32.xlu0 %v400, 90
          %v547 = vpop.permute.xlu0 %546
          %548 = vrot.lane.b32.xlu0 %v401, 90
          %v549 = vpop.permute.xlu0 %548
          %vm550 = vcmask 736256
          %v551 = vsel %vm550, %v541, %v543
          %v552 = vsel %vm550, %v543, %v545
          %v553 = vsel %vm550, %v545, %v547
          %v554 = vsel %vm550, %v547, %v549
          %v559 = vld [vmem:[%s2] sm:$0xff]
          %v560 = vld [vmem:[%s2 + $0x8] sm:$0xff]
          %vm561 = vcmask 588800
          %v563 = vsel %vm561, %v559, 0
          %v566 = vsel %vm561, %v560, 0
          %568 = vmatpush.msra.mxu0 0.0
          %569 = vmatpush.msra.mxu0 0.0
          %570 = vmatpush.msra.mxu0 0.0
          %571 = vmatpush.msra.mxu0 0.0
          %572 = vmatpush.msra.mxu0 0.0
          %573 = vmatpush.msra.mxu0 0.0
          %574 = vmatpush.msra.mxu0 0.0
          %575 = vmatpush.msra.mxu0 %v551
          %576 = vmatpush.msra.mxu0 %v532
          %577 = vmatpush.msra.mxu0 %v513
          %578 = vmatpush.msra.mxu0 %v494
          %579 = vmatpush.msra.mxu0 %v475
          %580 = vmatpush.msra.mxu0 %v456
          %581 = vmatpush.msra.mxu0 %v437
          %582 = vmatpush.msra.mxu0 %v418
          %583 = vmatpush.msra.mxu0 %v397
          %584 = vmatmul.f32.gmra.mxu0 %v563
          %v585 = vpop.f32.mrf.mxu0
          %v586 = vadd.f32 0.0, %v585
          %587 = vmatmul.f32.gmra.mxu0 %v566
          %v588 = vpop.f32.mrf.mxu0
          %v589 = vadd.f32 0.0, %v588
          %590 = vdwg.mxu0
          %591 = vmatpush.msra.mxu0 0.0
          %592 = vmatpush.msra.mxu0 0.0
          %593 = vmatpush.msra.mxu0 0.0
          %594 = vmatpush.msra.mxu0 0.0
          %595 = vmatpush.msra.mxu0 0.0
          %596 = vmatpush.msra.mxu0 0.0
          %597 = vmatpush.msra.mxu0 0.0
          %598 = vmatpush.msra.mxu0 %v552
          %599 = vmatpush.msra.mxu0 %v533
          %600 = vmatpush.msra.mxu0 %v514
          %601 = vmatpush.msra.mxu0 %v495
          %602 = vmatpush.msra.mxu0 %v476
          %603 = vmatpush.msra.mxu0 %v457
          %604 = vmatpush.msra.mxu0 %v438
          %605 = vmatpush.msra.mxu0 %v419
          %606 = vmatpush.msra.mxu0 %v398
          %607 = vmatmul.f32.gmra.mxu0 %v563
          %v608 = vpop.f32.mrf.mxu0
          %v609 = vadd.f32 0.0, %v608
          %610 = vmatmul.f32.gmra.mxu0 %v566
          %v611 = vpop.f32.mrf.mxu0
          %v612 = vadd.f32 0.0, %v611
          %613 = vdwg.mxu0
          %614 = vmatpush.msra.mxu0 0.0
          %615 = vmatpush.msra.mxu0 0.0
          %616 = vmatpush.msra.mxu0 0.0
          %617 = vmatpush.msra.mxu0 0.0
          %618 = vmatpush.msra.mxu0 0.0
          %619 = vmatpush.msra.mxu0 0.0
          %620 = vmatpush.msra.mxu0 0.0
          %621 = vmatpush.msra.mxu0 %v553
          %622 = vmatpush.msra.mxu0 %v534
          %623 = vmatpush.msra.mxu0 %v515
          %624 = vmatpush.msra.mxu0 %v496
          %625 = vmatpush.msra.mxu0 %v477
          %626 = vmatpush.msra.mxu0 %v458
          %627 = vmatpush.msra.mxu0 %v439
          %628 = vmatpush.msra.mxu0 %v420
          %629 = vmatpush.msra.mxu0 %v399
          %630 = vmatmul.f32.gmra.mxu0 %v563
          %v631 = vpop.f32.mrf.mxu0
          %v632 = vadd.f32 0.0, %v631
          %633 = vmatmul.f32.gmra.mxu0 %v566
          %v634 = vpop.f32.mrf.mxu0
          %v635 = vadd.f32 0.0, %v634
          %636 = vdwg.mxu0
          %637 = vmatpush.msra.mxu0 0.0
          %638 = vmatpush.msra.mxu0 0.0
          %639 = vmatpush.msra.mxu0 0.0
          %640 = vmatpush.msra.mxu0 0.0
          %641 = vmatpush.msra.mxu0 0.0
          %642 = vmatpush.msra.mxu0 0.0
          %643 = vmatpush.msra.mxu0 0.0
          %644 = vmatpush.msra.mxu0 %v554
          %645 = vmatpush.msra.mxu0 %v535
          %646 = vmatpush.msra.mxu0 %v516
          %647 = vmatpush.msra.mxu0 %v497
          %648 = vmatpush.msra.mxu0 %v478
          %649 = vmatpush.msra.mxu0 %v459
          %650 = vmatpush.msra.mxu0 %v440
          %651 = vmatpush.msra.mxu0 %v421
          %652 = vmatpush.msra.mxu0 %v400
          %653 = vmatmul.f32.gmra.mxu0 %v563
          %v654 = vpop.f32.mrf.mxu0
          %v655 = vadd.f32 0.0, %v654
          %656 = vmatmul.f32.gmra.mxu0 %v566
          %v657 = vpop.f32.mrf.mxu0
          %v658 = vadd.f32 0.0, %v657
          %659 = vdwg.mxu0
          %s660 = smul.u32 %s22, 8
          %s661 = smul.addr %s660, 8
          %s662 = scalar_lea.vmem [#allocation6], %s661
          %663 = vst [vmem:[%s662] sm:$0xff] %v586
          %664 = vst [vmem:[%s662 + $0x8] sm:$0xff] %v609
          %665 = vst [vmem:[%s662 + $0x10] sm:$0xff] %v632
          %666 = vst [vmem:[%s662 + $0x18] sm:$0xff] %v655
          %667 = vst [vmem:[%s662 + $0x20] sm:$0xff] %v589
          %668 = vst [vmem:[%s662 + $0x28] sm:$0xff] %v612
          %669 = vst [vmem:[%s662 + $0x30] sm:$0xff] %v635
          %670 = vst [vmem:[%s662 + $0x38] sm:$0xff] %v658
          %v671 = vld [vmem:[%s376] sm:$0xf]
          %v673 = vperm.slane %v671, 0
          %v674 = vperm.slane %v671, 1
          %v675 = vperm.slane %v671, 2
          %v676 = vperm.slane %v671, 3
          %v681 = vmul.f32 %v586, %v673
          %v682 = vmul.f32 %v609, %v674
          %v683 = vmul.f32 %v632, %v675
          %v684 = vmul.f32 %v655, %v676
          %v685 = vmul.f32 %v589, %v673
          %v686 = vmul.f32 %v612, %v674
          %v687 = vmul.f32 %v635, %v675
          %v688 = vmul.f32 %v658, %v676
          %v689 = vld [vmem:[#allocation2] sm:$0xff]
          %v690 = vld [vmem:[#allocation2 + $0x8] sm:$0xff]
          %v691 = vadd.f32 %v681, %v682
          %v692 = vadd.f32 %v691, %v683
          %v693 = vadd.f32 %v692, %v684
          %694 = vadd.xlane.f32.xlu0 %v693
          %v695 = vpop.xlane.xlu0 %694
          %v696 = vadd.f32 %v685, %v686
          %v697 = vadd.f32 %v696, %v687
          %v698 = vadd.f32 %v697, %v688
          %699 = vadd.xlane.f32.xlu0 %v698
          %v700 = vpop.xlane.xlu0 %699
          %v701 = vadd.f32 %v689, %v695
          %v702 = vadd.f32 %v690, %v700
          %vm703 = vcmask 7168
          %704 = vst.msk [vmem:[#allocation2] sm:$0xff] %vm703, %v701
          %705 = vst.msk [vmem:[#allocation2 + $0x8] sm:$0xff] %vm703, %v702
          %v706 = vld [vmem:[#allocation3] sm:$0xff]
          %v707 = vld [vmem:[#allocation3 + $0x8] sm:$0xff]
          %v708 = vmul.f32 %v681, %v586
          %v709 = vmul.f32 %v682, %v609
          %v710 = vmul.f32 %v683, %v632
          %v711 = vmul.f32 %v684, %v655
          %v712 = vmul.f32 %v685, %v589
          %v713 = vmul.f32 %v686, %v612
          %v714 = vmul.f32 %v687, %v635
          %v715 = vmul.f32 %v688, %v658
          %v716 = vadd.f32 %v708, %v709
          %v717 = vadd.f32 %v716, %v710
          %v718 = vadd.f32 %v717, %v711
          %719 = vadd.xlane.f32.xlu0 %v718
          %v720 = vpop.xlane.xlu0 %719
          %v721 = vadd.f32 %v712, %v713
          %v722 = vadd.f32 %v721, %v714
          %v723 = vadd.f32 %v722, %v715
          %724 = vadd.xlane.f32.xlu0 %v723
          %v725 = vpop.xlane.xlu0 %724
          %v726 = vadd.f32 %v706, %v720
          %v727 = vadd.f32 %v707, %v725
          %728 = vst.msk [vmem:[#allocation3] sm:$0xff] %vm703, %v726
          %729 = vst.msk [vmem:[#allocation3 + $0x8] sm:$0xff] %vm703, %v727
        $region52: #{conv_block_forward.1} parent=43 // pred_fallthru
          _
        %p730 = scmp.eq.s32.totalorder %s21, 1
        // Predicated region
        $region53: #{conv_block_forward.1} parent=43 // pred_check
          %p731 = pneg %p730
        $region54: #{conv_block_forward.1} parent=43 // pred_check_branch
          %733 = sbr.rel (%p731) target = $region56
        $region55: #{conv_block_forward.1} parent=43 // pred_region
          %s734 = smul.u32 %s22, 8
          %s735 = smul.addr %s734, 8
          %s736 = scalar_lea.vmem [#allocation6], %s735
          %v737 = vld [vmem:[%s736] sm:$0xff]
          %v738 = vld [vmem:[%s736 + $0x8] sm:$0xff]
          %v739 = vld [vmem:[%s736 + $0x10] sm:$0xff]
          %v740 = vld [vmem:[%s736 + $0x18] sm:$0xff]
          %v741 = vld [vmem:[%s736 + $0x20] sm:$0xff]
          %v742 = vld [vmem:[%s736 + $0x28] sm:$0xff]
          %v743 = vld [vmem:[%s736 + $0x30] sm:$0xff]
          %v744 = vld [vmem:[%s736 + $0x38] sm:$0xff]
          %v745 = vld [vmem:[#allocation4] sm:$0xff]
          %v746 = vld [vmem:[#allocation4 + $0x8] sm:$0xff]
          %748 = vset.pattern.permute.xlu0 0
          %749 = vperm.xlu0 %748, %v745
          %v750 = vpop.permute.xlu0 %749
          %753 = vset.pattern.permute.xlu0 0
          %754 = vperm.xlu0 %753, %v746
          %v755 = vpop.permute.xlu0 %754
          %v757 = vmul.f32 %v737, %v750
          %v758 = vmul.f32 %v738, %v750
          %v759 = vmul.f32 %v739, %v750
          %v760 = vmul.f32 %v740, %v750
          %v761 = vmul.f32 %v741, %v755
          %v762 = vmul.f32 %v742, %v755
          %v763 = vmul.f32 %v743, %v755
          %v764 = vmul.f32 %v744, %v755
          %v765 = vld [vmem:[#allocation5] sm:$0xff]
          %v766 = vld [vmem:[#allocation5 + $0x8] sm:$0xff]
          %768 = vset.pattern.permute.xlu0 0
          %769 = vperm.xlu0 %768, %v765
          %v770 = vpop.permute.xlu0 %769
          %773 = vset.pattern.permute.xlu0 0
          %774 = vperm.xlu0 %773, %v766
          %v775 = vpop.permute.xlu0 %774
          %v777 = vadd.f32 %v757, %v770
          %v778 = vadd.f32 %v758, %v770
          %v779 = vadd.f32 %v759, %v770
          %v780 = vadd.f32 %v760, %v770
          %v781 = vadd.f32 %v761, %v775
          %v782 = vadd.f32 %v762, %v775
          %v783 = vadd.f32 %v763, %v775
          %v784 = vadd.f32 %v764, %v775
          %v785 = vmax.f32 %v777, 0.0
          %v786 = vmax.f32 %v778, 0.0
          %v787 = vmax.f32 %v779, 0.0
          %v788 = vmax.f32 %v780, 0.0
          %v789 = vmax.f32 %v781, 0.0
          %v790 = vmax.f32 %v782, 0.0
          %v791 = vmax.f32 %v783, 0.0
          %v792 = vmax.f32 %v784, 0.0
          %793 = vst [vmem:[%s339] sm:$0xff] %v785
          %794 = vst [vmem:[%s339 + $0x8] sm:$0xff] %v786
          %795 = vst [vmem:[%s339 + $0x10] sm:$0xff] %v787
          %796 = vst [vmem:[%s339 + $0x18] sm:$0xff] %v788
          %797 = vst [vmem:[%s339 + $0x20] sm:$0xff] %v789
          %798 = vst [vmem:[%s339 + $0x28] sm:$0xff] %v790
          %799 = vst [vmem:[%s339 + $0x30] sm:$0xff] %v791
          %800 = vst [vmem:[%s339 + $0x38] sm:$0xff] %v792
        $region56: #{conv_block_forward.1} parent=43 // pred_fallthru
          _
        %p801 = scmp.eq.s32.totalorder %s22, 1
        %p802 = pnand %p383, %p801
        %p803 = pneg %p802
        // Predicated region
        $region57: #{conv_block_forward.1} parent=43 // pred_check
          _
        $region58: #{conv_block_forward.1} parent=43 // pred_check_branch
          %805 = sbr.rel (%p802) target = $region60
        $region59: #{conv_block_forward.1} parent=43 // pred_region
          %v806 = vld [vmem:[#allocation2] sm:$0xff]
          %v807 = vld [vmem:[#allocation2 + $0x8] sm:$0xff]
          %v808 = vmul.f32 %v806, 0.001953125
          %v809 = vmul.f32 %v807, 0.001953125
          %v810 = vld [vmem:[#allocation3] sm:$0xff]
          %v811 = vld [vmem:[#allocation3 + $0x8] sm:$0xff]
          %v812 = vmul.f32 %v810, 0.001953125
          %v813 = vmul.f32 %v811, 0.001953125
          %v814 = vmul.f32 %v808, %v808
          %v815 = vmul.f32 %v809, %v809
          %v816 = vsub.f32 %v812, %v814
          %v817 = vsub.f32 %v813, %v815
          %v818 = vmax.f32 %v816, 0.0
          %v819 = vmax.f32 %v817, 0.0
          %v820 = vld [vmem:[%s3] sm:$0xff]
          %v821 = vld [vmem:[%s3 + $0x8] sm:$0xff]
          %v822 = vadd.f32 %v818, 1e-05
          %v823 = vadd.f32 %v819, 1e-05
          %v824 = vrsqrt.pop %v822
          %v825 = vmul.f32 %v824, %v822
          %v826 = vmul.f32 %v825, %v824
          %v827 = vmul.f32 0.5, %v826
          %v828 = vsub.f32 1.5, %v827
          %v829 = vmul.f32 %v824, %v828
          %vm830 = vweird.f32 %v822
          %vm831 = vweird.f32 %v824
          %vm832 = vmor %vm830, %vm831
          %v833 = vsel %vm832, %v824, %v829
          %v834 = vrsqrt.pop %v823
          %v835 = vmul.f32 %v834, %v823
          %v836 = vmul.f32 %v835, %v834
          %v837 = vmul.f32 0.5, %v836
          %v838 = vsub.f32 1.5, %v837
          %v839 = vmul.f32 %v834, %v838
          %vm840 = vweird.f32 %v823
          %vm841 = vweird.f32 %v834
          %vm842 = vmor %vm840, %vm841
          %v843 = vsel %vm842, %v834, %v839
          %v844 = vmul.f32 %v820, %v833
          %v845 = vmul.f32 %v821, %v843
          %vm846 = vcmask 7168
          %847 = vst.msk [vmem:[#allocation4] sm:$0xff] %vm846, %v844
          %848 = vst.msk [vmem:[#allocation4 + $0x8] sm:$0xff] %vm846, %v845
          %v849 = vld [vmem:[%s4] sm:$0xff]
          %v850 = vld [vmem:[%s4 + $0x8] sm:$0xff]
          %v851 = vmul.f32 %v808, %v844
          %v852 = vmul.f32 %v809, %v845
          %v853 = vsub.f32 %v849, %v851
          %v854 = vsub.f32 %v850, %v852
          %855 = vst.msk [vmem:[#allocation5] sm:$0xff] %vm846, %v853
          %856 = vst.msk [vmem:[#allocation5 + $0x8] sm:$0xff] %vm846, %v854
        $region60: #{conv_block_forward.1} parent=43 // pred_fallthru
          _
        %s857 = sand.u32 %s198, 1
        %s858 = sand.u32 %s198, 1
        %s859 = smul.addr %s858, 64
        %s860 = scalar_lea.vmem [#allocation7], %s859
        // Predicated region
        $region61: #{conv_block_forward.1} parent=43 // pred_check
          %p861 = pneg %p208
        $region62: #{conv_block_forward.1} parent=43 // pred_check_branch
          %863 = sbr.rel (%p861) target = $region64
        $region63: #{conv_block_forward.1} parent=43 // pred_region
          %s864 = smul.u32 %s22, %s21
          %s865 = smul.u32 4, %s864
          %s866 = smul.addr %s865, 8
          %s867 = scalar_lea.vmem %s6, %s866
          // Predicated region
          $region65: #{conv_block_forward.1} parent=63 // pred_check
            _
          $region66: #{conv_block_forward.1} parent=63 // pred_check_branch
            %869 = sbr.rel (0) target = $region68
          $region67: #{conv_block_forward.1} parent=63 // pred_region
            // Predicated region
            $region69: #{conv_block_forward.1} parent=67 // pred_check
              _
            $region70: #{conv_block_forward.1} parent=67 // pred_check_branch
              %871 = sbr.rel (0) target = $region72
            $region71: #{conv_block_forward.1} parent=67 // pred_region
              loop: start=0, step=1, limit=1
              $region73: #{conv_block_forward.1} parent=71 // loop_pre_header
                _
              $region74: #{conv_block_forward.1} parent=71 // loop_header
                %s873 = sphi 0, %s877
                %p874 = scmp.ge.s32.totalorder %s873, 1
                %s878 = sphi %s860, %s860
                %s879 = sphi %s867, %s867
              $region75: #{conv_block_forward.1} parent=71 // loop_header_branch
                %876 = sbr.rel (%p874) target = $region79
              $region76: #{conv_block_forward.1} parent=71 // loop_body
                %v880 = vld [vmem:[%s878] sm:$0xff]
                %881 = vst [vmem:[%s879] sm:$0xff] %v880
                %v882 = vld [vmem:[%s878 + $0x8] sm:$0xff]
                %883 = vst [vmem:[%s879 + $0x8] sm:$0xff] %v882
                %v884 = vld [vmem:[%s878 + $0x10] sm:$0xff]
                %885 = vst [vmem:[%s879 + $0x10] sm:$0xff] %v884
                %v886 = vld [vmem:[%s878 + $0x18] sm:$0xff]
                %887 = vst [vmem:[%s879 + $0x18] sm:$0xff] %v886
                %v888 = vld [vmem:[%s878 + $0x20] sm:$0xff]
                %889 = vst [vmem:[%s879 + $0x40] sm:$0xff] %v888
                %v890 = vld [vmem:[%s878 + $0x28] sm:$0xff]
                %891 = vst [vmem:[%s879 + $0x48] sm:$0xff] %v890
                %v892 = vld [vmem:[%s878 + $0x30] sm:$0xff]
                %893 = vst [vmem:[%s879 + $0x50] sm:$0xff] %v892
                %v894 = vld [vmem:[%s878 + $0x38] sm:$0xff]
                %895 = vst [vmem:[%s879 + $0x58] sm:$0xff] %v894
              $region77: #{conv_block_forward.1} parent=71 // loop_footer
                %s877 = sadd.s32 1, %s873
              $region78: #{conv_block_forward.1} parent=71 // loop_footer_branch
                %872 = sbr.rel target = $region74
              $region79: #{conv_block_forward.1} parent=71 // loop_exit
                _
            $region72: #{conv_block_forward.1} parent=67 // pred_fallthru
              _
            // Predicated region
            $region80: #{conv_block_forward.1} parent=67 // pred_check
              _
            $region81: #{conv_block_forward.1} parent=67 // pred_check_branch
              %897 = sbr.rel target = $region83
            $region82: #{conv_block_forward.1} parent=67 // pred_region
              _
            $region83: #{conv_block_forward.1} parent=67 // pred_fallthru
              _
          $region68: #{conv_block_forward.1} parent=63 // pred_fallthru
            _
          %898 = vnop
        $region64: #{conv_block_forward.1} parent=43 // pred_fallthru
          _
      $region44: #{conv_block_forward.1} parent=5 // pred_fallthru
        _
      %p899 = scmp.le.s32.totalorder 2, %s12
      // Predicated region
      $region84: #{conv_block_forward.1} parent=5 // pred_check
        %p900 = pneg %p899
      $region85: #{conv_block_forward.1} parent=5 // pred_check_branch
        %902 = sbr.rel (%p900) target = $region87
      $region86: #{conv_block_forward.1} parent=5 // pred_region
        %s903 = ssub.s32 %s12, 2
        // Predicated region
        $region88: #{conv_block_forward.1} parent=86 // pred_check
          %p904 = pneg %p214
        $region89: #{conv_block_forward.1} parent=86 // pred_check_branch
          %906 = sbr.rel (%p904) target = $region91
        $region90: #{conv_block_forward.1} parent=86 // pred_region
          %s907 = sand.u32 %s199, 1
          %s908 = sand.u32 %s199, 1
          %s909 = smul.addr %s908, 64
          %s910 = scalar_lea.vmem [#allocation7], %s909
        $region91: #{conv_block_forward.1} parent=86 // pred_fallthru
          _
      $region87: #{conv_block_forward.1} parent=5 // pred_fallthru
        _
    $region6: #{conv_block_forward.1} parent=1 // loop_footer
      %s16 = sadd.s32 1, %s12
    $region7: #{conv_block_forward.1} parent=1 // loop_footer_branch
      %11 = sbr.rel target = $region3
    $region8: #{conv_block_forward.1} parent=1 // loop_exit
      _

</llo_original>
